<compile_context>
chip_gen: v7x
topology: tpu7x:2x2x1
jax: 0.10.0
libtpu: 0.0.40
codegen_flags: <defaults>
</compile_context>

<pallas_src>
import functools
import math

import jax
import jax.numpy as jnp
import numpy as np
from jax import lax
from jax.experimental import pallas as pl
from jax.experimental.pallas import tpu as pltpu

LN_EPS = 1e-5   # torch.nn.LayerNorm default
_LANE = 128


# -----------------------------------------------------------------------------
# Pallas kernel: fused (patch-merge gather) + LayerNorm(folded) + Linear(no bias)
#   x_ref : (tr, hs, W2, ws*C)  zero-copy view of the un-merged input tile
#   w_ref : (hs, ws*C, Dp)      gamma-folded, pre-transposed reduction weight (bf16)
#   b_ref : (1, Dp)             beta @ W.T                    (f32)
#   cs_ref: (1, Dp)             column sums of the folded W   (f32)
#   o_ref : (tr*W2, Dp)
# -----------------------------------------------------------------------------
def _merge_ln_linear_kernel(x_ref, w_ref, b_ref, cs_ref, o_ref):
    tr, hs, w2, wsc = x_ref.shape
    m = tr * w2
    inv_feat = 1.0 / (hs * wsc)
    mxu_dtype = w_ref.dtype

    s = None
    ss = None
    acc = None
    # One h-offset slice at a time: f32 row statistics on the fly + bf16 MXU matmul
    # with f32 accumulation.  No centered/normalized full-tile copies are kept live
    # across the loop — the LayerNorm is applied in the epilogue below.
    for k in range(hs):
        # Layout-trivial reshape when W2 % 8 == 0 (the intended regime); for
        # W2 % 8 != 0 Mosaic inserts a relayout copy of this one slice only.
        xk = x_ref[:, k, :, :].reshape(m, wsc)
        xk32 = xk.astype(jnp.float32)
        sk = xk32.sum(axis=-1, keepdims=True)
        ssk = (xk32 * xk32).sum(axis=-1, keepdims=True)
        pk = jnp.dot(xk.astype(mxu_dtype), w_ref[k],
                     preferred_element_type=jnp.float32)
        if k == 0:
            s, ss, acc = sk, ssk, pk
        else:
            s, ss, acc = s + sk, ss + ssk, acc + pk

    # LayerNorm folded into the matmul epilogue:
    #   ln(x) @ (gamma*W.T)  ==  ((x @ W') - mean * colsum(W')) * inv_std
    mean = s * inv_feat
    var = ss * inv_feat - mean * mean                       # biased var (torch)
    inv_std = lax.rsqrt(jnp.maximum(var, 0.0) + LN_EPS)
    out = (acc - mean * cs_ref[...]) * inv_std + b_ref[...]  # + beta @ W.T
    o_ref[...] = out.astype(o_ref.dtype)


# -----------------------------------------------------------------------------
# One-time parameter preparation (off the hot path).
# -----------------------------------------------------------------------------
def prepare_params(red_weight, ln_weight, ln_bias, *, hs=2, ws=2,
                   mxu_dtype=jnp.bfloat16, lane=_LANE):
    """Fold LN affine into the reduction weight, pre-transpose, precompute the
    column sums used by the in-kernel LN fold, and zero-pad Dout up to a lane
    multiple so the kernel's output stores are lane-dense."""
    dout, feat = red_weight.shape
    assert feat % hs == 0
    wsc = feat // hs                                          # = ws * C
    w_t = jnp.transpose(red_weight).astype(jnp.float32)       # (F, Dout)
    w_fold = ln_weight.astype(jnp.float32)[:, None] * w_t     # gamma fold
    bias = ln_bias.astype(jnp.float32) @ w_t                  # beta fold, (Dout,)

    dout_p = ((dout + lane - 1) // lane) * lane
    if dout_p != dout:
        w_fold = jnp.pad(w_fold, ((0, 0), (0, dout_p - dout)))
        bias = jnp.pad(bias, (0, dout_p - dout))

    w_folded = w_fold.reshape(hs, wsc, dout_p).astype(mxu_dtype)
    colsum = w_folded.astype(jnp.float32).sum(axis=(0, 1)).reshape(1, dout_p)
    return {"w_folded": w_folded,
            "bias_row": bias.reshape(1, dout_p),
            "colsum": colsum}


# -----------------------------------------------------------------------------
# Per-generation row-tile / VMEM-limit selection.
# -----------------------------------------------------------------------------
def _select_row_tile(R, W2, wsc, dout_p, hs, in_itemsize, out_itemsize):
    try:
        vmem_cap = int(pltpu.get_tpu_info().vmem_capacity_bytes)
    except Exception:
        vmem_cap = 64 << 20                      # conservative fallback (v7x per-TC)
    small_vmem = vmem_cap < (100 << 20)          # v7x: 64 MiB/TC; v5e/v6e: 128 MiB

    # Per xv-row VMEM cost: double-buffered input/output blocks + transient
    # per-h-slice f32/bf16 temporaries + the f32 accumulator and row stats.
    in_row = hs * W2 * wsc * in_itemsize
    out_row = W2 * dout_p * out_itemsize
    trans_row = W2 * (wsc * (4 + 4 + 2) + dout_p * 4 + 4 * 4)
    per_row = 2 * in_row + 2 * out_row + trans_row
    # Double-buffered weight block + bias/colsum + compiler internal scratch.
    fixed = 2 * (hs * wsc * dout_p * 2) + 4 * (dout_p * 4) + (4 << 20)

    budget = int((0.60 if small_vmem else 0.75) * vmem_cap)
    tr_vmem = max(1, (budget - fixed) // per_row)

    # v6e/v5e (128 MiB) take much larger blocks than v7x (64 MiB).
    target_rows = 4096 if small_vmem else 8192   # output rows per grid step
    tr_target = max(1, target_rows // max(W2, 1))

    tr = max(1, min(tr_vmem, tr_target, R))
    if R >= 4:
        tr = min(tr, max(1, R // 4))             # >= 4 steps -> >= 2 per TC on v7x
    if tr < R:
        # 2-D output block: keep (tr * W2) % 8 == 0 (sublane-aligned stores).
        align = 8 // math.gcd(8, W2)
        tr = (tr // align) * align
        if tr == 0:
            tr = min(align, R)
    tr = min(tr, R)

    vmem_limit = int(min(0.72 * vmem_cap,
                         max(32 << 20, 1.35 * (fixed + tr * per_row))))
    return tr, vmem_limit


# -----------------------------------------------------------------------------
# PatchMerging2D forward (spatial_dims=2), channel-last input (permute_=False).
# -----------------------------------------------------------------------------
def patch_merging_2d(x, params, *, out_features, hs=2, ws=2, out_dtype=None):
    w_folded = params["w_folded"]
    bias_row = params["bias_row"]
    colsum = params["colsum"]

    B, H, W, C = x.shape
    # Same (quirky) padding rule as the torch module: only triggers on remainder 1.
    if (H % hs == 1) or (W % ws == 1):
        x = jnp.pad(x, ((0, 0), (0, H % 2), (0, W % 2), (0, 0)))
        B, H, W, C = x.shape
    assert H % hs == 0 and W % ws == 0, "spatial dims must be divisible by scale"

    H2, W2 = H // hs, W // ws
    wsc = ws * C
    dout_p = w_folded.shape[-1]
    assert w_folded.shape == (hs, wsc, dout_p)
    out_dtype = x.dtype if out_dtype is None else jnp.dtype(out_dtype)

    # Zero-copy view (B,H,W,C) -> (R, hs, W2, ws*C).  The virtual concat order
    # [h0w0 | h0w1 | h1w0 | h1w1] * C matches torch _patch_merge (itertools.product,
    # h-offset major) and the weight reshape in prepare_params.
    R = B * H2
    xv = x.reshape(R, hs, W2, wsc)

    tr, vmem_limit = _select_row_tile(R, W2, wsc, dout_p, hs,
                                      x.dtype.itemsize, jnp.dtype(out_dtype).itemsize)
    m_tile = tr * W2
    # Ragged tail (R % tr != 0) handled by Pallas partial-block masking: no HBM
    # round-trip from jnp.pad on the input or slicing on the output.
    grid = (pl.cdiv(R, tr),)

    out2d = pl.pallas_call(
        _merge_ln_linear_kernel,
        out_shape=jax.ShapeDtypeStruct((R * W2, dout_p), out_dtype),
        grid_spec=pltpu.PrefetchScalarGridSpec(
            num_scalar_prefetch=0,
            grid=grid,
            in_specs=[
                pl.BlockSpec((tr, hs, W2, wsc), lambda i: (i, 0, 0, 0)),
                pl.BlockSpec((hs, wsc, dout_p), lambda i: (0, 0, 0)),
                pl.BlockSpec((1, dout_p), lambda i: (0, 0)),
                pl.BlockSpec((1, dout_p), lambda i: (0, 0)),
            ],
            out_specs=pl.BlockSpec((m_tile, dout_p), lambda i: (i, 0)),
        ),
        compiler_params=pltpu.CompilerParams(
            dimension_semantics=("parallel",),
            vmem_limit_bytes=vmem_limit,
        ),
    )(xv, w_folded, bias_row, colsum)

    out = out2d.reshape(B, H2, W2, dout_p)      # zero-copy leading-dim split
    if dout_p != out_features:
        out = out[..., :out_features]           # only when Dout was lane-padded
    return out


# -----------------------------------------------------------------------------
# Pure-JAX reference implementing the torch module's math (f32 throughout).
# -----------------------------------------------------------------------------
def _reference(x, red_weight, ln_weight, ln_bias, *, hs=2, ws=2):
    B, H, W, C = x.shape
    if (H % hs == 1) or (W % ws == 1):
        x = jnp.pad(x, ((0, 0), (0, H % 2), (0, W % 2), (0, 0)))
        B, H, W, C = x.shape
    H2, W2 = H // hs, W // ws
    xm = x.reshape(B, H2, hs, W2, ws, C)
    xm = jnp.transpose(xm, (0, 1, 3, 2, 4, 5)).reshape(B, H2, W2, hs * ws * C)
    xf = xm.astype(jnp.float32)
    mean = jnp.mean(xf, axis=-1, keepdims=True)
    var = jnp.mean((xf - mean) ** 2, axis=-1, keepdims=True)
    xn = (xf - mean) / jnp.sqrt(var + LN_EPS)
    xn = xn * ln_weight.astype(jnp.float32) + ln_bias.astype(jnp.float32)
    return xn @ red_weight.astype(jnp.float32).T


# TODO(synk): spatial_dims=3 variant (zs slices) not implemented; the module's dead
# SHAPE_FIX warning branch (references the non-existent self.scale) is skipped.

if __name__ == "__main__":
    key = jax.random.PRNGKey(0)
    kx, kw, kg, kb = jax.random.split(key, 4)

    # Small shapes consistent with the module: spatial_dims=2, scale=2.
    B, C, H, W = 2, 4, 16, 16
    scale = 2
    F_in = scale * scale * C            # input_feature_size = 16
    output_features = 32

    # Channel-last input (B, H, W, C) == forward(x, permute_=False).
    x = jax.random.normal(kx, (B, H, W, C), dtype=jnp.float32)

    # Synthetic module parameters (shapes from the module __init__).
    red_weight = (jax.random.normal(kw, (output_features, F_in), jnp.float32)
                  * (1.0 / np.sqrt(F_in)))          # nn.Linear(F, out, bias=False)
    ln_weight = 1.0 + 0.1 * jax.random.normal(kg, (F_in,), jnp.float32)
    ln_bias = 0.1 * jax.random.normal(kb, (F_in,), jnp.float32)

    params = prepare_params(red_weight, ln_weight, ln_bias, hs=scale, ws=scale)
    fwd = jax.jit(functools.partial(patch_merging_2d, out_features=output_features,
                                    hs=scale, ws=scale))

    # f32 I/O path.
    out = jax.block_until_ready(fwd(x, params))
    assert out.shape == (B, H // scale, W // scale, output_features)
    ref = np.asarray(_reference(x, red_weight, ln_weight, ln_bias, hs=scale, ws=scale))
    # Tolerance accounts for bf16 MXU operands (stats / accumulation are f32).
    np.testing.assert_allclose(np.asarray(out), ref, rtol=3e-2, atol=3e-2)

    # bf16 I/O path (production contract when the surrounding model runs bf16).
    x_bf = x.astype(jnp.bfloat16)
    out_bf = jax.block_until_ready(fwd(x_bf, params))
    ref_bf = np.asarray(_reference(x_bf.astype(jnp.float32), red_weight, ln_weight,
                                   ln_bias, hs=scale, ws=scale))
    np.testing.assert_allclose(np.asarray(out_bf.astype(jnp.float32)), ref_bf,
                               rtol=6e-2, atol=6e-2)

    print("KERNEL_OK")
</pallas_src>

<mosaic_0001>
module attributes {stable_mosaic.version = 11 : i64} {
  func.func @_merge_ln_linear_kernel(%arg0: i32, %arg1: memref<4x2x8x8xf32, #tpu.memory_space<vmem>>, %arg2: memref<2x8x128xbf16, #tpu.memory_space<vmem>>, %arg3: memref<1x128xf32, #tpu.memory_space<vmem>>, %arg4: memref<1x128xf32, #tpu.memory_space<vmem>>, %arg5: memref<32x128xf32, #tpu.memory_space<vmem>>) attributes {dimension_semantics = [#tpu.dimension_semantics<parallel>], iteration_bounds = array<i64: 4>, scalar_prefetch = 0 : i64, scratch_operands = 0 : i64, tpu.core_type = #tpu.core_type<tc>, window_params = [{transform_indices = @transform_0, window_bounds = array<i64: 4, 2, 8, 8>}, {pipeline_mode = #tpu.pipeline_mode<synchronous>, transform_indices = @transform_1, window_bounds = array<i64: 2, 8, 128>}, {pipeline_mode = #tpu.pipeline_mode<synchronous>, transform_indices = @transform_2, window_bounds = array<i64: 1, 128>}, {pipeline_mode = #tpu.pipeline_mode<synchronous>, transform_indices = @transform_3, window_bounds = array<i64: 1, 128>}, {transform_indices = @transform_4, window_bounds = array<i64: 32, 128>}]} {
    %c0 = arith.constant 0 : index
    %c0_0 = arith.constant 0 : index
    %c0_1 = arith.constant 0 : index
    %c0_2 = arith.constant 0 : index
    %0 = vector.load %arg1[%c0, %c0_0, %c0_1, %c0_2] : memref<4x2x8x8xf32, #tpu.memory_space<vmem>>, vector<4x1x8x8xf32>
    %1 = vector.shape_cast %0 : vector<4x1x8x8xf32> to vector<4x8x8xf32>
    %2 = vector.shape_cast %1 : vector<4x8x8xf32> to vector<32x8xf32>
    %cst = arith.constant dense<0.000000e+00> : vector<32xf32>
    %3 = vector.multi_reduction <add>, %2, %cst [1] : vector<32x8xf32> to vector<32xf32>
    %4 = vector.shape_cast %3 : vector<32xf32> to vector<32x1xf32>
    %5 = arith.mulf %2, %2 : vector<32x8xf32>
    %cst_3 = arith.constant dense<0.000000e+00> : vector<32xf32>
    %6 = vector.multi_reduction <add>, %5, %cst_3 [1] : vector<32x8xf32> to vector<32xf32>
    %7 = vector.shape_cast %6 : vector<32xf32> to vector<32x1xf32>
    %8 = arith.truncf %2 : vector<32x8xf32> to vector<32x8xbf16>
    %c0_4 = arith.constant 0 : index
    %c0_5 = arith.constant 0 : index
    %c0_6 = arith.constant 0 : index
    %9 = vector.load %arg2[%c0_4, %c0_5, %c0_6] : memref<2x8x128xbf16, #tpu.memory_space<vmem>>, vector<1x8x128xbf16>
    %10 = vector.shape_cast %9 : vector<1x8x128xbf16> to vector<8x128xbf16>
    %cst_7 = arith.constant dense<0.000000e+00> : vector<32x128xf32>
    %11 = tpu.matmul %8, %10, %cst_7 {dimension_numbers = #tpu.dot_dimension_numbers<[1], [0], [0], [1], [0, 0, 1, 1], [], []>} : vector<32x8xbf16>, vector<8x128xbf16>, vector<32x128xf32> -> vector<32x128xf32>
    %c0_8 = arith.constant 0 : index
    %c1 = arith.constant 1 : index
    %c0_9 = arith.constant 0 : index
    %c0_10 = arith.constant 0 : index
    %12 = vector.load %arg1[%c0_8, %c1, %c0_9, %c0_10] : memref<4x2x8x8xf32, #tpu.memory_space<vmem>>, vector<4x1x8x8xf32>
    %13 = vector.shape_cast %12 : vector<4x1x8x8xf32> to vector<4x8x8xf32>
    %14 = vector.shape_cast %13 : vector<4x8x8xf32> to vector<32x8xf32>
    %cst_11 = arith.constant dense<0.000000e+00> : vector<32xf32>
    %15 = vector.multi_reduction <add>, %14, %cst_11 [1] : vector<32x8xf32> to vector<32xf32>
    %16 = vector.shape_cast %15 : vector<32xf32> to vector<32x1xf32>
    %17 = arith.mulf %14, %14 : vector<32x8xf32>
    %cst_12 = arith.constant dense<0.000000e+00> : vector<32xf32>
    %18 = vector.multi_reduction <add>, %17, %cst_12 [1] : vector<32x8xf32> to vector<32xf32>
    %19 = vector.shape_cast %18 : vector<32xf32> to vector<32x1xf32>
    %20 = arith.truncf %14 : vector<32x8xf32> to vector<32x8xbf16>
    %c1_13 = arith.constant 1 : index
    %c0_14 = arith.constant 0 : index
    %c0_15 = arith.constant 0 : index
    %21 = vector.load %arg2[%c1_13, %c0_14, %c0_15] : memref<2x8x128xbf16, #tpu.memory_space<vmem>>, vector<1x8x128xbf16>
    %22 = vector.shape_cast %21 : vector<1x8x128xbf16> to vector<8x128xbf16>
    %cst_16 = arith.constant dense<0.000000e+00> : vector<32x128xf32>
    %23 = tpu.matmul %20, %22, %cst_16 {dimension_numbers = #tpu.dot_dimension_numbers<[1], [0], [0], [1], [0, 0, 1, 1], [], []>} : vector<32x8xbf16>, vector<8x128xbf16>, vector<32x128xf32> -> vector<32x128xf32>
    %24 = arith.addf %4, %16 : vector<32x1xf32>
    %25 = arith.addf %7, %19 : vector<32x1xf32>
    %26 = arith.addf %11, %23 : vector<32x128xf32>
    %cst_17 = arith.constant 6.250000e-02 : f32
    %27 = vector.broadcast %cst_17 : f32 to vector<32x1xf32>
    %28 = arith.mulf %24, %27 : vector<32x1xf32>
    %cst_18 = arith.constant 6.250000e-02 : f32
    %29 = vector.broadcast %cst_18 : f32 to vector<32x1xf32>
    %30 = arith.mulf %25, %29 : vector<32x1xf32>
    %31 = arith.mulf %28, %28 : vector<32x1xf32>
    %32 = arith.subf %30, %31 : vector<32x1xf32>
    %cst_19 = arith.constant 0.000000e+00 : f32
    %33 = vector.broadcast %cst_19 : f32 to vector<32x1xf32>
    %34 = arith.maximumf %32, %33 : vector<32x1xf32>
    %cst_20 = arith.constant 9.99999974E-6 : f32
    %35 = vector.broadcast %cst_20 : f32 to vector<32x1xf32>
    %36 = arith.addf %34, %35 : vector<32x1xf32>
    %37 = math.rsqrt %36 : vector<32x1xf32>
    %c0_21 = arith.constant 0 : index
    %c0_22 = arith.constant 0 : index
    %38 = vector.load %arg4[%c0_21, %c0_22] : memref<1x128xf32, #tpu.memory_space<vmem>>, vector<1x128xf32>
    %39 = vector.broadcast %28 : vector<32x1xf32> to vector<32x128xf32>
    %40 = vector.broadcast %38 : vector<1x128xf32> to vector<32x128xf32>
    %41 = arith.mulf %39, %40 : vector<32x128xf32>
    %42 = arith.subf %26, %41 : vector<32x128xf32>
    %43 = vector.broadcast %37 : vector<32x1xf32> to vector<32x128xf32>
    %44 = arith.mulf %42, %43 : vector<32x128xf32>
    %c0_23 = arith.constant 0 : index
    %c0_24 = arith.constant 0 : index
    %45 = vector.load %arg3[%c0_23, %c0_24] : memref<1x128xf32, #tpu.memory_space<vmem>>, vector<1x128xf32>
    %46 = vector.broadcast %45 : vector<1x128xf32> to vector<32x128xf32>
    %47 = arith.addf %44, %46 : vector<32x128xf32>
    %c0_25 = arith.constant 0 : index
    %c0_26 = arith.constant 0 : index
    %48 = vector.load %arg5[%c0_25, %c0_26] : memref<32x128xf32, #tpu.memory_space<vmem>>, vector<32x128xf32>
    tpu.vector_store %arg5[%c0_25, %c0_26], %47 {strides = array<i32>} : memref<32x128xf32, #tpu.memory_space<vmem>>, vector<32x128xf32>,
    return
  }
  func.func @transform_0(%arg0: i32) -> (i32, i32, i32, i32) {
    %c0_i32 = arith.constant 0 : i32
    %c0_i32_0 = arith.constant 0 : i32
    %c0_i32_1 = arith.constant 0 : i32
    %c0_i32_2 = arith.constant 0 : i32
    return %arg0, %c0_i32, %c0_i32_0, %c0_i32_1 : i32, i32, i32, i32
  }
  func.func @transform_1(%arg0: i32) -> (i32, i32, i32) {
    %c0_i32 = arith.constant 0 : i32
    %c0_i32_0 = arith.constant 0 : i32
    %c0_i32_1 = arith.constant 0 : i32
    %c0_i32_2 = arith.constant 0 : i32
    return %c0_i32, %c0_i32_0, %c0_i32_1 : i32, i32, i32
  }
  func.func @transform_2(%arg0: i32) -> (i32, i32) {
    %c0_i32 = arith.constant 0 : i32
    %c0_i32_0 = arith.constant 0 : i32
    %c0_i32_1 = arith.constant 0 : i32
    return %c0_i32, %c0_i32_0 : i32, i32
  }
  func.func @transform_3(%arg0: i32) -> (i32, i32) {
    %c0_i32 = arith.constant 0 : i32
    %c0_i32_0 = arith.constant 0 : i32
    %c0_i32_1 = arith.constant 0 : i32
    return %c0_i32, %c0_i32_0 : i32, i32
  }
  func.func @transform_4(%arg0: i32) -> (i32, i32) {
    %c0_i32 = arith.constant 0 : i32
    %c0_i32_0 = arith.constant 0 : i32
    return %arg0, %c0_i32 : i32, i32
  }
}

</mosaic_0001>

<llo_original>
// kernel: patch_merging_2d.1
$region0: #{patch_merging_2d.1}
  #allocation0 [shape = 'u32[]', space=smem, size = 0x4, offset = 0x4, fixed_abs, tag = 'smem constant byte address 0x4 - core index']
  #allocation1 [shape = 'u32[144,128]{1,0:T(1,128)}', space=vmem, size = 0x12000, scoped, tag = 'internal scratch']
  %s0 = inlined_call_operand.vmem [shape: f32[16,2,8,8], index: 0, kind: input, shape index: {}]
  %s1 = inlined_call_operand.vmem [shape: bf16[2,8,128], index: 1, kind: input, shape index: {}]
  %s2 = inlined_call_operand.vmem [shape: f32[1,128], index: 2, kind: input, shape index: {}]
  %s3 = inlined_call_operand.vmem [shape: f32[1,128], index: 3, kind: input, shape index: {}]
  %s4 = inlined_call_operand.hbm [shape: f32[128,128], index: 4, kind: output, shape index: {}]
  %s5 = sld [smem:[#allocation0]]
  $region49: #{patch_merging_2d.1} parent=0
    _
  %s7 = ssub.s32 1, %s5
  %s8 = scalar_select 0, %s7, %s5
  $region1: #{patch_merging_2d.1} parent=0
    #allocation2 [shape = 'u8[32768]{0}', space=vmem, size = 0x8000, scoped, tag = 'output window, operand 0']
    #allocation3 [shape = 's32[2]{0}', space=sflag, size = 0x8, scoped, tag = 'scoped memory for patch_merging_2d.1']
    %9 = vsyncpa [#allocation3], 0
    %s10 = scalar_lea.sflag [#allocation3], 1
    %11 = vsyncpa %s10, 0
    loop: start=0, step=1, limit=6
    $region2: #{patch_merging_2d.1} parent=1 // loop_pre_header
      _
    $region3: #{patch_merging_2d.1} parent=1 // loop_header
      %s13 = sphi 0, %s17
      %p14 = scmp.ge.s32.totalorder %s13, 6
      %s23 = sphi 0, %s25
      %s26 = sphi 0, %s23
      %s27 = sphi 0, %s26
      %s43 = sphi 0, %s27
      %s47 = sphi 0, %s47
      %s49 = sphi 0, %s47
      %s50 = sphi 0, %s49
      %s64 = sphi 0, %s50
      %s68 = sphi 0, %s68
      %s70 = sphi 0, %s68
      %s71 = sphi 0, %s70
      %s85 = sphi 0, %s71
      %s89 = sphi 0, %s89
      %s91 = sphi 0, %s89
      %s92 = sphi 0, %s91
      %s106 = sphi 0, %s92
      %s112 = sphi 0, %s114
      %s115 = sphi 0, %s112
      %s116 = sphi 0, %s115
      %s132 = sphi 0, %s116
    $region4: #{patch_merging_2d.1} parent=1 // loop_header_branch
      %16 = sbr.rel (%p14) target = $region8
    $region5: #{patch_merging_2d.1} parent=1 // loop_body
      %s18 = ssub.s32 %s13, 1
      %s19 = ssub.s32 %s13, 2
      %s20 = sadd.s32 %s13, 1
      %s21 = ssub.s32 %s13, %s20
      %p22 = scmp.eq.s32.totalorder %s21, 0
      %s24 = sadd.s32 %s23, 1
      %s25 = scalar_select %p22, %s23, %s24
      %p28 = pneg %p22
      %p29 = scmp.eq.s32.totalorder %s13, 3
      %p30 = por %p28, %p29
      %p31 = scmp.ne.s32.totalorder %s23, %s26
      %p32 = scmp.eq.s32.totalorder %s13, 0
      %p33 = por %p31, %p32
      %p34 = scmp.ne.s32.totalorder %s23, %s26
      %p35 = scmp.eq.s32.totalorder %s18, 3
      %p36 = por %p34, %p35
      %p37 = scmp.ne.s32.totalorder %s26, %s27
      %p38 = scmp.eq.s32.totalorder %s18, 0
      %p39 = por %p37, %p38
      %p40 = scmp.ne.s32.totalorder %s26, %s27
      %p41 = scmp.eq.s32.totalorder %s19, 3
      %p42 = por %p40, %p41
      %p44 = scmp.ne.s32.totalorder %s27, %s43
      %p45 = scmp.eq.s32.totalorder %s19, 0
      %p46 = por %p44, %p45
      %s48 = sadd.s32 %s47, 1
      %p51 = scmp.eq.s32.totalorder %s13, 3
      %p52 = scmp.ne.s32.totalorder %s47, %s49
      %p53 = scmp.eq.s32.totalorder %s13, 0
      %p54 = por %p52, %p53
      %p55 = scmp.ne.s32.totalorder %s47, %s49
      %p56 = scmp.eq.s32.totalorder %s18, 3
      %p57 = por %p55, %p56
      %p58 = scmp.ne.s32.totalorder %s49, %s50
      %p59 = scmp.eq.s32.totalorder %s18, 0
      %p60 = por %p58, %p59
      %p61 = scmp.ne.s32.totalorder %s49, %s50
      %p62 = scmp.eq.s32.totalorder %s19, 3
      %p63 = por %p61, %p62
      %p65 = scmp.ne.s32.totalorder %s50, %s64
      %p66 = scmp.eq.s32.totalorder %s19, 0
      %p67 = por %p65, %p66
      %s69 = sadd.s32 %s68, 1
      %p72 = scmp.eq.s32.totalorder %s13, 3
      %p73 = scmp.ne.s32.totalorder %s68, %s70
      %p74 = scmp.eq.s32.totalorder %s13, 0
      %p75 = por %p73, %p74
      %p76 = scmp.ne.s32.totalorder %s68, %s70
      %p77 = scmp.eq.s32.totalorder %s18, 3
      %p78 = por %p76, %p77
      %p79 = scmp.ne.s32.totalorder %s70, %s71
      %p80 = scmp.eq.s32.totalorder %s18, 0
      %p81 = por %p79, %p80
      %p82 = scmp.ne.s32.totalorder %s70, %s71
      %p83 = scmp.eq.s32.totalorder %s19, 3
      %p84 = por %p82, %p83
      %p86 = scmp.ne.s32.totalorder %s71, %s85
      %p87 = scmp.eq.s32.totalorder %s19, 0
      %p88 = por %p86, %p87
      %s90 = sadd.s32 %s89, 1
      %p93 = scmp.eq.s32.totalorder %s13, 3
      %p94 = scmp.ne.s32.totalorder %s89, %s91
      %p95 = scmp.eq.s32.totalorder %s13, 0
      %p96 = por %p94, %p95
      %p97 = scmp.ne.s32.totalorder %s89, %s91
      %p98 = scmp.eq.s32.totalorder %s18, 3
      %p99 = por %p97, %p98
      %p100 = scmp.ne.s32.totalorder %s91, %s92
      %p101 = scmp.eq.s32.totalorder %s18, 0
      %p102 = por %p100, %p101
      %p103 = scmp.ne.s32.totalorder %s91, %s92
      %p104 = scmp.eq.s32.totalorder %s19, 3
      %p105 = por %p103, %p104
      %p107 = scmp.ne.s32.totalorder %s92, %s106
      %p108 = scmp.eq.s32.totalorder %s19, 0
      %p109 = por %p107, %p108
      %s110 = ssub.s32 %s13, %s20
      %p111 = scmp.eq.s32.totalorder %s110, 0
      %s113 = sadd.s32 %s112, 1
      %s114 = scalar_select %p111, %s112, %s113
      %p117 = pneg %p111
      %p118 = scmp.eq.s32.totalorder %s13, 3
      %p119 = por %p117, %p118
      %p120 = scmp.ne.s32.totalorder %s112, %s115
      %p121 = scmp.eq.s32.totalorder %s13, 0
      %p122 = por %p120, %p121
      %p123 = scmp.ne.s32.totalorder %s112, %s115
      %p124 = scmp.eq.s32.totalorder %s18, 3
      %p125 = por %p123, %p124
      %p126 = scmp.ne.s32.totalorder %s115, %s116
      %p127 = scmp.eq.s32.totalorder %s18, 0
      %p128 = por %p126, %p127
      %p129 = scmp.ne.s32.totalorder %s115, %s116
      %p130 = scmp.eq.s32.totalorder %s19, 3
      %p131 = por %p129, %p130
      %p133 = scmp.ne.s32.totalorder %s116, %s132
      %p134 = scmp.eq.s32.totalorder %s19, 0
      %p135 = por %p133, %p134
      %p136 = scmp.le.s32.totalorder 1, %s13
      %p137 = scmp.lt.s32.totalorder %s13, 5
      %p138 = pnand %p136, %p137
      %p139 = pneg %p138
      // Predicated region
      $region9: #{patch_merging_2d.1} parent=5 // pred_check
        _
      $region10: #{patch_merging_2d.1} parent=5 // pred_check_branch
        %141 = sbr.rel (%p138) target = $region12
      $region11: #{patch_merging_2d.1} parent=5 // pred_region
        %s142 = ssub.s32 %s13, 1
        // Predicated region
        $region13: #{patch_merging_2d.1} parent=11 // pred_check
          %p143 = pneg %p60
        $region14: #{patch_merging_2d.1} parent=11 // pred_check_branch
          %145 = sbr.rel (%p143) target = $region16
        $region15: #{patch_merging_2d.1} parent=11 // pred_region
          _
        $region16: #{patch_merging_2d.1} parent=11 // pred_fallthru
          _
        // Predicated region
        $region17: #{patch_merging_2d.1} parent=11 // pred_check
          %p146 = pneg %p81
        $region18: #{patch_merging_2d.1} parent=11 // pred_check_branch
          %148 = sbr.rel (%p146) target = $region20
        $region19: #{patch_merging_2d.1} parent=11 // pred_region
          _
        $region20: #{patch_merging_2d.1} parent=11 // pred_fallthru
          _
        // Predicated region
        $region21: #{patch_merging_2d.1} parent=11 // pred_check
          %p149 = pneg %p102
        $region22: #{patch_merging_2d.1} parent=11 // pred_check_branch
          %151 = sbr.rel (%p149) target = $region24
        $region23: #{patch_merging_2d.1} parent=11 // pred_region
          _
        $region24: #{patch_merging_2d.1} parent=11 // pred_fallthru
          _
      $region12: #{patch_merging_2d.1} parent=5 // pred_fallthru
        _
      %p152 = scmp.lt.s32.totalorder %s13, 4
      // Predicated region
      $region25: #{patch_merging_2d.1} parent=5 // pred_check
        %p153 = pneg %p152
      $region26: #{patch_merging_2d.1} parent=5 // pred_check_branch
        %155 = sbr.rel (%p153) target = $region28
      $region27: #{patch_merging_2d.1} parent=5 // pred_region
        // Predicated region
        $region29: #{patch_merging_2d.1} parent=27 // pred_check
          %p156 = pneg %p33
        $region30: #{patch_merging_2d.1} parent=27 // pred_check_branch
          %158 = sbr.rel (%p156) target = $region32
        $region31: #{patch_merging_2d.1} parent=27 // pred_region
          %s159 = smul.u32 4, %s13
          %p160 = scmp.lt.s32.totalorder %s159, 15
          %s161 = scalar_select %p160, %s159, 15
          %s162 = smul.addr %s161, 2
          %s163 = smul.addr %s162, 8
          %s164 = scalar_lea.vmem %s0, %s163
          %s165 = smul.u32 4, %s13
        $region32: #{patch_merging_2d.1} parent=27 // pred_fallthru
          _
      $region28: #{patch_merging_2d.1} parent=5 // pred_fallthru
        _
      %p166 = scmp.le.s32.totalorder 1, %s13
      %p167 = scmp.lt.s32.totalorder %s13, 5
      %p168 = pnand %p166, %p167
      %p169 = pneg %p168
      // Predicated region
      $region33: #{patch_merging_2d.1} parent=5 // pred_check
        _
      $region34: #{patch_merging_2d.1} parent=5 // pred_check_branch
        %171 = sbr.rel (%p168) target = $region36
      $region35: #{patch_merging_2d.1} parent=5 // pred_region
        %s172 = ssub.s32 %s13, 1
        %s173 = smul.u32 4, %s18
        %p174 = scmp.lt.s32.totalorder %s173, 15
        %s175 = scalar_select %p174, %s173, 15
        %s176 = smul.addr %s175, 2
        %s177 = smul.addr %s176, 8
        %s178 = scalar_lea.vmem %s0, %s177
        %p179 = pneg %p39
        %p180 = pneg %p36
        %p181 = pneg %p60
        %p182 = pneg %p57
        %p183 = pneg %p81
        %p184 = pneg %p78
        %p185 = pneg %p102
        %p186 = pneg %p99
        %p187 = pneg %p128
        %p188 = pneg %p125
        %s189 = sand.u32 %s115, 1
        %s190 = scalar_lea.sflag [#allocation3], %s189
        %s191 = sand.u32 %s115, 1
        %s192 = smul.addr %s191, 32
        %s193 = scalar_lea.vmem [#allocation2], %s192
        %s194 = smul.u32 4, %s18
        %p195 = scmp.lt.s32.totalorder %s194, 15
        %s196 = scalar_select %p195, %s194, 15
        %s197 = smul.addr %s196, 2
        %s198 = smul.addr %s197, 8
        %s199 = scalar_lea.vmem %s0, %s198
        %s200 = smul.u32 4, %s18
        %s201 = smul.u32 4, %s18
        %v203 = vld [vmem:[%s199] sm:$0xff]
        %v204 = vld [vmem:[%s199 + $0x10] sm:$0xff]
        %v205 = vld [vmem:[%s199 + $0x20] sm:$0xff]
        %v206 = vld [vmem:[%s199 + $0x30] sm:$0xff]
        %vm207 = vcmask 64512
        %v208 = vsel %vm207, %v203, 0.0
        %209 = vadd.xlane.f32.xlu0 %v208
        %v210 = vpop.xlane.xlu0 %209
        %v211 = vsel %vm207, %v204, 0.0
        %212 = vadd.xlane.f32.xlu0 %v211
        %v213 = vpop.xlane.xlu0 %212
        %v214 = vsel %vm207, %v205, 0.0
        %215 = vadd.xlane.f32.xlu0 %v214
        %v216 = vpop.xlane.xlu0 %215
        %v217 = vsel %vm207, %v206, 0.0
        %218 = vadd.xlane.f32.xlu0 %v217
        %v219 = vpop.xlane.xlu0 %218
        %v220 = vmul.f32 %v203, %v203
        %v221 = vmul.f32 %v204, %v204
        %v222 = vmul.f32 %v205, %v205
        %v223 = vmul.f32 %v206, %v206
        %v224 = vsel %vm207, %v220, 0.0
        %225 = vadd.xlane.f32.xlu0 %v224
        %v226 = vpop.xlane.xlu0 %225
        %v227 = vsel %vm207, %v221, 0.0
        %228 = vadd.xlane.f32.xlu0 %v227
        %v229 = vpop.xlane.xlu0 %228
        %v230 = vsel %vm207, %v222, 0.0
        %231 = vadd.xlane.f32.xlu0 %v230
        %v232 = vpop.xlane.xlu0 %231
        %v233 = vsel %vm207, %v223, 0.0
        %234 = vadd.xlane.f32.xlu0 %v233
        %v235 = vpop.xlane.xlu0 %234
        %v236 = vpack.c.bf16 %v204, %v203
        %v237 = vpack.c.bf16 %v206, %v205
        %v238 = vld [vmem:[%s1] sm:$0xf]
        %s239 = scalar_lea.vmem %s199, 8
        %v240 = vld [vmem:[%s239] sm:$0xff]
        %v241 = vld [vmem:[%s239 + $0x10] sm:$0xff]
        %v242 = vld [vmem:[%s239 + $0x20] sm:$0xff]
        %v243 = vld [vmem:[%s239 + $0x30] sm:$0xff]
        %v244 = vsel %vm207, %v240, 0.0
        %245 = vadd.xlane.f32.xlu0 %v244
        %v246 = vpop.xlane.xlu0 %245
        %v247 = vsel %vm207, %v241, 0.0
        %248 = vadd.xlane.f32.xlu0 %v247
        %v249 = vpop.xlane.xlu0 %248
        %v250 = vsel %vm207, %v242, 0.0
        %251 = vadd.xlane.f32.xlu0 %v250
        %v252 = vpop.xlane.xlu0 %251
        %v253 = vsel %vm207, %v243, 0.0
        %254 = vadd.xlane.f32.xlu0 %v253
        %v255 = vpop.xlane.xlu0 %254
        %v256 = vmul.f32 %v240, %v240
        %v257 = vmul.f32 %v241, %v241
        %v258 = vmul.f32 %v242, %v242
        %v259 = vmul.f32 %v243, %v243
        %v260 = vsel %vm207, %v256, 0.0
        %261 = vadd.xlane.f32.xlu0 %v260
        %v262 = vpop.xlane.xlu0 %261
        %v263 = vsel %vm207, %v257, 0.0
        %264 = vadd.xlane.f32.xlu0 %v263
        %v265 = vpop.xlane.xlu0 %264
        %v266 = vsel %vm207, %v258, 0.0
        %267 = vadd.xlane.f32.xlu0 %v266
        %v268 = vpop.xlane.xlu0 %267
        %v269 = vsel %vm207, %v259, 0.0
        %270 = vadd.xlane.f32.xlu0 %v269
        %v271 = vpop.xlane.xlu0 %270
        %v272 = vpack.c.bf16 %v241, %v240
        %v273 = vpack.c.bf16 %v243, %v242
        %s274 = scalar_lea.vmem %s1, 4
        %v275 = vld [vmem:[%s274] sm:$0xf]
        %v277 = vsel %vm207, %v272, 0
        %v280 = vsel %vm207, %v273, 0
        %vm282 = vcmask 1043456
        %v284 = vsel %vm282, %v275, 0
        %286 = vmatprep.subr.bf16.mxu0 0
        %287 = vmatpush1.bf16.msra.mxu0 %v284
        %288 = vmatprep.subr.bf16.mxu0 0
        %289 = vmatpush1.bf16.msra.mxu0 0
        %290 = vmatprep.subr.bf16.mxu0 0
        %291 = vmatpush1.bf16.msra.mxu0 0
        %292 = vmatprep.subr.bf16.mxu0 0
        %293 = vmatpush1.bf16.msra.mxu0 0
        %294 = vmatprep.subr.bf16.mxu0 0
        %295 = vmatpush1.bf16.msra.mxu0 0
        %296 = vmatprep.subr.bf16.mxu0 0
        %297 = vmatpush1.bf16.msra.mxu0 0
        %298 = vmatprep.subr.bf16.mxu0 0
        %299 = vmatpush1.bf16.msra.mxu0 0
        %300 = vmatprep.subr.bf16.mxu0 0
        %301 = vmatpush1.bf16.msra.mxu0 0
        %302 = vmatprep.subr.bf16.mxu0 0
        %303 = vmatpush1.bf16.msra.mxu0 0
        %304 = vmatprep.subr.bf16.mxu0 0
        %305 = vmatpush1.bf16.msra.mxu0 0
        %306 = vmatprep.subr.bf16.mxu0 0
        %307 = vmatpush1.bf16.msra.mxu0 0
        %308 = vmatprep.subr.bf16.mxu0 0
        %309 = vmatpush1.bf16.msra.mxu0 0
        %310 = vmatprep.subr.bf16.mxu0 0
        %311 = vmatpush1.bf16.msra.mxu0 0
        %312 = vmatprep.subr.bf16.mxu0 0
        %313 = vmatpush1.bf16.msra.mxu0 0
        %314 = vmatprep.subr.bf16.mxu0 0
        %315 = vmatpush1.bf16.msra.mxu0 0
        %316 = vmatprep.subr.bf16.mxu0 0
        %317 = vmatpush1.bf16.msra.mxu0 0
        %318 = vmatprep.mubr.bf16.mxu0 0
        %319 = vmatmul.mubr.bf16.gmra.mrb[0].mxu0 %v277
        %v320 = vpop.f32.mrb[0].mxu0
        %v321 = vadd.f32 0.0, %v320
        %v322 = vpop.f32.mrb[0].mxu0
        %v323 = vpop.f32.mrb[0].mxu0
        %v324 = vadd.f32 0.0, %v323
        %v325 = vpop.f32.mrb[0].mxu0
        %326 = vmatprep.mubr.bf16.mxu0 0
        %327 = vmatmul.mubr.bf16.gmra.mrb[0].mxu0 %v280
        %v328 = vpop.f32.mrb[0].mxu0
        %v329 = vadd.f32 0.0, %v328
        %v330 = vpop.f32.mrb[0].mxu0
        %v331 = vpop.f32.mrb[0].mxu0
        %v332 = vadd.f32 0.0, %v331
        %v333 = vpop.f32.mrb[0].mxu0
        %334 = vdwg.mxu0
        %v335 = vadd.f32 %v210, %v246
        %v336 = vadd.f32 %v213, %v249
        %v337 = vadd.f32 %v216, %v252
        %v338 = vadd.f32 %v219, %v255
        %v339 = vadd.f32 %v226, %v262
        %v340 = vadd.f32 %v229, %v265
        %v341 = vadd.f32 %v232, %v268
        %v342 = vadd.f32 %v235, %v271
        %v344 = vsel %vm207, %v236, 0
        %v347 = vsel %vm207, %v237, 0
        %v350 = vsel %vm282, %v238, 0
        %352 = vmatprep.subr.bf16.mxu0 0
        %353 = vmatpush1.bf16.msra.mxu0 %v350
        %354 = vmatprep.subr.bf16.mxu0 0
        %355 = vmatpush1.bf16.msra.mxu0 0
        %356 = vmatprep.subr.bf16.mxu0 0
        %357 = vmatpush1.bf16.msra.mxu0 0
        %358 = vmatprep.subr.bf16.mxu0 0
        %359 = vmatpush1.bf16.msra.mxu0 0
        %360 = vmatprep.subr.bf16.mxu0 0
        %361 = vmatpush1.bf16.msra.mxu0 0
        %362 = vmatprep.subr.bf16.mxu0 0
        %363 = vmatpush1.bf16.msra.mxu0 0
        %364 = vmatprep.subr.bf16.mxu0 0
        %365 = vmatpush1.bf16.msra.mxu0 0
        %366 = vmatprep.subr.bf16.mxu0 0
        %367 = vmatpush1.bf16.msra.mxu0 0
        %368 = vmatprep.subr.bf16.mxu0 0
        %369 = vmatpush1.bf16.msra.mxu0 0
        %370 = vmatprep.subr.bf16.mxu0 0
        %371 = vmatpush1.bf16.msra.mxu0 0
        %372 = vmatprep.subr.bf16.mxu0 0
        %373 = vmatpush1.bf16.msra.mxu0 0
        %374 = vmatprep.subr.bf16.mxu0 0
        %375 = vmatpush1.bf16.msra.mxu0 0
        %376 = vmatprep.subr.bf16.mxu0 0
        %377 = vmatpush1.bf16.msra.mxu0 0
        %378 = vmatprep.subr.bf16.mxu0 0
        %379 = vmatpush1.bf16.msra.mxu0 0
        %380 = vmatprep.subr.bf16.mxu0 0
        %381 = vmatpush1.bf16.msra.mxu0 0
        %382 = vmatprep.subr.bf16.mxu0 0
        %383 = vmatpush1.bf16.msra.mxu0 0
        %384 = vmatprep.mubr.bf16.mxu0 0
        %385 = vmatmul.mubr.bf16.gmra.mrb[0].mxu0 %v344
        %v386 = vpop.f32.mrb[0].mxu0
        %v387 = vadd.f32 %v321, %v386
        %v388 = vpop.f32.mrb[0].mxu0
        %v389 = vpop.f32.mrb[0].mxu0
        %v390 = vadd.f32 %v324, %v389
        %v391 = vpop.f32.mrb[0].mxu0
        %392 = vmatprep.mubr.bf16.mxu0 0
        %393 = vmatmul.mubr.bf16.gmra.mrb[0].mxu0 %v347
        %v394 = vpop.f32.mrb[0].mxu0
        %v395 = vadd.f32 %v329, %v394
        %v396 = vpop.f32.mrb[0].mxu0
        %v397 = vpop.f32.mrb[0].mxu0
        %v398 = vadd.f32 %v332, %v397
        %v399 = vpop.f32.mrb[0].mxu0
        %400 = vdwg.mxu0
        %v401 = vmul.f32 %v335, 0.0625
        %v402 = vmul.f32 %v336, 0.0625
        %v403 = vmul.f32 %v337, 0.0625
        %v404 = vmul.f32 %v338, 0.0625
        %v405 = vmul.f32 %v339, 0.0625
        %v406 = vmul.f32 %v340, 0.0625
        %v407 = vmul.f32 %v341, 0.0625
        %v408 = vmul.f32 %v342, 0.0625
        %v409 = vmul.f32 %v401, %v401
        %v410 = vmul.f32 %v402, %v402
        %v411 = vmul.f32 %v403, %v403
        %v412 = vmul.f32 %v404, %v404
        %v413 = vsub.f32 %v405, %v409
        %v414 = vsub.f32 %v406, %v410
        %v415 = vsub.f32 %v407, %v411
        %v416 = vsub.f32 %v408, %v412
        %v417 = vmax.f32 %v413, 0.0
        %v418 = vmax.f32 %v414, 0.0
        %v419 = vmax.f32 %v415, 0.0
        %v420 = vmax.f32 %v416, 0.0
        %v421 = vadd.f32 %v417, 1e-05
        %v422 = vadd.f32 %v418, 1e-05
        %v423 = vadd.f32 %v419, 1e-05
        %v424 = vadd.f32 %v420, 1e-05
        %v425 = vrsqrt.pop %v421
        %v426 = vrsqrt.pop %v422
        %v427 = vrsqrt.pop %v423
        %v428 = vrsqrt.pop %v424
        %v429 = vld [vmem:[%s3] sm:$0x1]
        %v431 = vlaneseq
        %v432 = vshrl.u32 %v431, 7
        %v433 = vsub.s32 0, %v432
        %v434 = vrot.slane %v429, %v433
        %v436 = vmul.f32 %v401, %v434
        %v437 = vmul.f32 %v402, %v434
        %v438 = vmul.f32 %v403, %v434
        %v439 = vmul.f32 %v404, %v434
        %v440 = vsub.f32 %v387, %v436
        %v441 = vsub.f32 %v390, %v437
        %v442 = vsub.f32 %v395, %v438
        %v443 = vsub.f32 %v398, %v439
        %v444 = vmul.f32 %v440, %v425
        %v445 = vmul.f32 %v441, %v426
        %v446 = vmul.f32 %v442, %v427
        %v447 = vmul.f32 %v443, %v428
        %v448 = vld [vmem:[%s2] sm:$0x1]
        %v450 = vlaneseq
        %v451 = vshrl.u32 %v450, 7
        %v452 = vsub.s32 0, %v451
        %v453 = vrot.slane %v448, %v452
        %v455 = vadd.f32 %v444, %v453
        %v456 = vadd.f32 %v445, %v453
        %v457 = vadd.f32 %v446, %v453
        %v458 = vadd.f32 %v447, %v453
        %459 = vst [vmem:[%s193] sm:$0xff] %v455
        %460 = vst [vmem:[%s193 + $0x8] sm:$0xff] %v456
        %461 = vst [vmem:[%s193 + $0x10] sm:$0xff] %v457
        %462 = vst [vmem:[%s193 + $0x18] sm:$0xff] %v458
        %s463 = sand.u32 %s115, 1
        %s464 = scalar_lea.sflag [#allocation3], %s463
        %s465 = sand.u32 %s115, 1
        %s466 = smul.addr %s465, 32
        %s467 = scalar_lea.vmem [#allocation2], %s466
        // Predicated region
        $region37: #{patch_merging_2d.1} parent=35 // pred_check
          %p468 = pneg %p125
        $region38: #{patch_merging_2d.1} parent=35 // pred_check_branch
          %470 = sbr.rel (%p468) target = $region40
        $region39: #{patch_merging_2d.1} parent=35 // pred_region
          %s471 = smul.u32 4, %s18
          %s473 = ssub.s32 512, 512
          %474 = vsyncadd %s464, %s473
          %s475 = smul.addr %s471, 128
          %s476 = scalar_lea.hbm %s4, %s475
          %s477 = sshll.u32 %s467, 4
          %s478 = int_to_ptr.vmem [resolvable:$true] %s477
          %483 = dma.vmem_to_hbm [thread:$0]  %s478, 512, %s476, %s464, 128, 128, 8
        $region40: #{patch_merging_2d.1} parent=35 // pred_fallthru
          _
      $region36: #{patch_merging_2d.1} parent=5 // pred_fallthru
        _
      %p484 = scmp.le.s32.totalorder 2, %s13
      // Predicated region
      $region41: #{patch_merging_2d.1} parent=5 // pred_check
        %p485 = pneg %p484
      $region42: #{patch_merging_2d.1} parent=5 // pred_check_branch
        %487 = sbr.rel (%p485) target = $region44
      $region43: #{patch_merging_2d.1} parent=5 // pred_region
        %s488 = ssub.s32 %s13, 2
        // Predicated region
        $region45: #{patch_merging_2d.1} parent=43 // pred_check
          %p489 = pneg %p131
        $region46: #{patch_merging_2d.1} parent=43 // pred_check_branch
          %491 = sbr.rel (%p489) target = $region48
        $region47: #{patch_merging_2d.1} parent=43 // pred_region
          %s492 = sand.u32 %s116, 1
          %s493 = scalar_lea.sflag [#allocation3], %s492
          %s494 = sand.u32 %s116, 1
          %s495 = smul.addr %s494, 32
          %s496 = scalar_lea.vmem [#allocation2], %s495
          %497 = dma.done %s493, 512
        $region48: #{patch_merging_2d.1} parent=43 // pred_fallthru
          _
      $region44: #{patch_merging_2d.1} parent=5 // pred_fallthru
        _
    $region6: #{patch_merging_2d.1} parent=1 // loop_footer
      %s17 = sadd.s32 1, %s13
    $region7: #{patch_merging_2d.1} parent=1 // loop_footer_branch
      %12 = sbr.rel target = $region3
    $region8: #{patch_merging_2d.1} parent=1 // loop_exit
      _
    %498 = vsyncpa [#allocation3], 1
    %s499 = scalar_lea.sflag [#allocation3], 1
    %500 = vsyncpa %s499, 1

</llo_original>
